<compile_context>
chip_gen: v6e
topology: v6e:2x2x1
jax: 0.10.0
libtpu: 0.0.40
codegen_flags: <defaults>
</compile_context>

<pallas_src>
import jax
import jax.numpy as jnp
from jax.experimental import pallas as pl
from jax.experimental.pallas import tpu as pltpu


def _round_up(x, m):
    return (x + m - 1) // m * m


def _actor_kernel(a_ref, x_ref, w1_ref, b1_ref, w2_ref, b2_ref,
                  wh_ref, bh_ref, out_ref):
    """Trunk (Linear->PReLU->Linear->PReLU) + lane-dense head matmul.

    All matmuls take bf16 operands with f32 accumulation; PReLU scalars come
    from the packed SMEM array a_ref = [a1, a2]; the head pre-activation is
    stored in bf16 (activations applied in the wrapper on the real columns).
    """
    h = jnp.dot(x_ref[...].astype(jnp.bfloat16), w1_ref[...],
                preferred_element_type=jnp.float32) + b1_ref[...]
    h = jnp.where(h > 0, h, a_ref[0] * h)
    h = jnp.dot(h.astype(jnp.bfloat16), w2_ref[...],
                preferred_element_type=jnp.float32) + b2_ref[...]
    h = jnp.where(h > 0, h, a_ref[1] * h)
    pre = jnp.dot(h.astype(jnp.bfloat16), wh_ref[...],
                  preferred_element_type=jnp.float32) + bh_ref[...]
    out_ref[...] = pre.astype(out_ref.dtype)


def init_actor_params(key, n_features, n_actions, is_continues=None,
                      weight_dtype=jnp.bfloat16):
    """Synthetic params, stored pre-transposed ([in, out]) and lane-padded."""
    H = n_features * 8
    Hp = _round_up(H, 128)
    ks = jax.random.split(key, 10)

    def pad2(a, rows, cols):
        return jnp.pad(a, ((0, rows - a.shape[0]), (0, cols - a.shape[1])))

    w1 = jax.random.normal(ks[0], (n_features, H), jnp.float32) * 0.1
    b1 = jax.random.normal(ks[1], (1, H), jnp.float32) * 0.01
    w2 = jax.random.normal(ks[2], (H, H), jnp.float32) * 0.1
    b2 = jax.random.normal(ks[3], (1, H), jnp.float32) * 0.01

    params = {
        "w1": pad2(w1, n_features, Hp).astype(weight_dtype),
        "b1": pad2(b1, 1, Hp),
        "w2": pad2(w2, Hp, Hp).astype(weight_dtype),
        "b2": pad2(b2, 1, Hp),
        "a": jnp.full((2,), 0.25, jnp.float32),   # PReLU scalars (default init)
        "n_actions": n_actions,
        "hidden": H,
    }
    if is_continues:
        wmu = jax.random.normal(ks[4], (H, 1), jnp.float32) * 0.1
        bmu = jax.random.normal(ks[5], (1, 1), jnp.float32) * 0.01
        wsg = jax.random.normal(ks[6], (H, 1), jnp.float32) * 0.1
        bsg = jax.random.normal(ks[7], (1, 1), jnp.float32) * 0.01
        # Fused head: col 0 = mu pre-activation, col 1 = sigma pre-activation.
        w_head = jnp.concatenate([wmu, wsg], axis=1)   # [H, 2]
        b_head = jnp.concatenate([bmu, bsg], axis=1)   # [1, 2]
        params["w_head"] = pad2(w_head, Hp, 128).astype(weight_dtype)
        params["b_head"] = pad2(b_head, 1, 128)
    else:
        Np = _round_up(n_actions, 128)
        w3 = jax.random.normal(ks[8], (H, n_actions), jnp.float32) * 0.1
        b3 = jax.random.normal(ks[9], (1, n_actions), jnp.float32) * 0.01
        params["w_head"] = pad2(w3, Hp, Np).astype(weight_dtype)
        params["b_head"] = pad2(b3, 1, Np)
    return params


def _vmem_capacity_bytes():
    try:
        return int(pltpu.get_tpu_info().vmem_capacity_bytes)
    except Exception:
        return 64 << 20        # conservative: v7x per-TensorCore VMEM


def _pick_batch_tile(B):
    """Batch tile: multiple of 16 (bf16 output sublane packing); >= 2 grid
    steps whenever B exceeds one tile so v7x's two TensorCores both get work;
    capped at 512 rows so big batches amortize per-step overhead on v5e/v6e
    without blowing the v7x VMEM budget."""
    if B <= 16:
        return 16
    half = (B + 1) // 2
    return min(512, _round_up(half, 16))


def actor_forward(params, x, is_continues=None):
    """Pallas implementation of Actor.forward (batch-gridded, pipelined)."""
    B, F = x.shape
    w1, b1 = params["w1"], params["b1"]
    w2, b2 = params["w2"], params["b2"]
    wh, bh = params["w_head"], params["b_head"]
    Hp = w1.shape[1]
    Nout = wh.shape[1]

    bt = _pick_batch_tile(B)
    Bp = _round_up(B, bt)
    if Bp != B:
        x = jnp.pad(x, ((0, Bp - B), (0, 0)))
    grid = (Bp // bt,)

    x_spec = pl.BlockSpec((bt, F), lambda i: (i, 0))
    out_spec = pl.BlockSpec((bt, Nout), lambda i: (i, 0))
    smem_spec = pl.BlockSpec(memory_space=pltpu.SMEM)

    def nbytes(a):
        return a.size * a.dtype.itemsize

    weight_bytes = sum(nbytes(a) for a in (w1, b1, w2, b2, wh, bh))
    io_bytes = 2 * bt * F * 4 + 2 * bt * Nout * 2   # double-buffered x / bf16 out
    act_bytes = 3 * bt * Hp * 4                     # f32 h + bf16 staging + slack
    cap = _vmem_capacity_bytes()

    def build(weight_buffers):
        # weight_buffers=1 -> single-buffered resident weights (constant
        # index_map, no per-step re-DMA); None -> default double buffering.
        pm = pl.Buffered(weight_buffers) if weight_buffers is not None else None

        def const_spec(arr):
            if pm is None:
                return pl.BlockSpec(arr.shape, lambda i: (0, 0))
            return pl.BlockSpec(arr.shape, lambda i: (0, 0), pipeline_mode=pm)

        wb = weight_buffers if weight_buffers is not None else 2
        est = int((wb * weight_bytes + io_bytes + act_bytes) * 1.25) + (4 << 20)
        # Floor 32 MiB (v5e's default scoped VMEM is only 16 MiB, so the
        # explicit limit does real work there); cap at the queried physical
        # capacity minus headroom (64 MiB per TensorCore on v7x).
        vmem_limit = int(min(max(est, 32 << 20), cap - (8 << 20)))

        in_specs = [smem_spec, x_spec,
                    const_spec(w1), const_spec(b1),
                    const_spec(w2), const_spec(b2),
                    const_spec(wh), const_spec(bh)]
        return pl.pallas_call(
            _actor_kernel,
            grid=grid,
            out_shape=jax.ShapeDtypeStruct((Bp, Nout), jnp.bfloat16),
            in_specs=in_specs,
            out_specs=out_spec,
            compiler_params=pltpu.CompilerParams(
                dimension_semantics=("parallel",),
                vmem_limit_bytes=vmem_limit),
        )

    args = (params["a"], x, w1, b1, w2, b2, wh, bh)
    try:
        out = build(1)(*args)
    except Exception:
        # Narrow fallback for jax versions where pl.Buffered(1) is not accepted
        # by the TPU pallas_call pipeline; semantics are identical.
        out = build(None)(*args)

    out = out[:B].astype(jnp.float32)
    if is_continues:
        # Activations applied to the two real lanes only (col0=mu, col1=sigma).
        return jnp.tanh(out[:, 0:1]), jax.nn.softplus(out[:, 1:2])
    return out[:, :params["n_actions"]]


def _reference_forward(params, x, is_continues=None):
    """Pure-JAX reference following the same bf16-weight / f32-accum path
    (head pre-activations rounded to bf16 like the kernel's output store)."""
    bf = jnp.bfloat16
    a = params["a"]
    h = jnp.dot(x.astype(bf), params["w1"],
                preferred_element_type=jnp.float32) + params["b1"]
    h = jnp.where(h > 0, h, a[0] * h)
    h = jnp.dot(h.astype(bf), params["w2"],
                preferred_element_type=jnp.float32) + params["b2"]
    h = jnp.where(h > 0, h, a[1] * h)
    pre = jnp.dot(h.astype(bf), params["w_head"],
                  preferred_element_type=jnp.float32) + params["b_head"]
    pre = pre.astype(bf).astype(jnp.float32)
    if is_continues:
        return jnp.tanh(pre[:, 0:1]), jax.nn.softplus(pre[:, 1:2])
    return pre[:, :params["n_actions"]]


if __name__ == "__main__":
    key = jax.random.PRNGKey(0)
    n_features = 16      # hidden = 128
    n_actions = 4
    batch = 8

    kx, kp1, kp2 = jax.random.split(key, 3)
    x = jax.random.normal(kx, (batch, n_features), jnp.float32)

    # Discrete-action branch (default is_continues=None): action logits.
    params_d = init_actor_params(kp1, n_features, n_actions, is_continues=None)
    logits = jax.block_until_ready(actor_forward(params_d, x, is_continues=None))
    ref_logits = _reference_forward(params_d, x, is_continues=None)
    assert logits.shape == (batch, n_actions)
    assert jnp.allclose(logits, ref_logits, atol=2e-2, rtol=2e-2), (
        float(jnp.max(jnp.abs(logits - ref_logits))))

    # Continuous-action branch (is_continues=True): returns (mu, sigma).
    params_c = init_actor_params(kp2, n_features, n_actions, is_continues=True)
    mu, sigma = actor_forward(params_c, x, is_continues=True)
    mu = jax.block_until_ready(mu)
    sigma = jax.block_until_ready(sigma)
    ref_mu, ref_sigma = _reference_forward(params_c, x, is_continues=True)
    assert mu.shape == (batch, 1) and sigma.shape == (batch, 1)
    assert jnp.allclose(mu, ref_mu, atol=2e-2, rtol=2e-2)
    assert jnp.allclose(sigma, ref_sigma, atol=2e-2, rtol=2e-2)
    assert bool(jnp.all(sigma > 0))

    print("KERNEL_OK")
</pallas_src>

<mosaic_0001>
module attributes {stable_mosaic.version = 11 : i64} {
  func.func @_actor_kernel(%arg0: i32, %arg1: memref<2xf32, #tpu.memory_space<smem>>, %arg2: memref<16x16xf32, #tpu.memory_space<vmem>>, %arg3: memref<16x128xbf16, #tpu.memory_space<vmem>>, %arg4: memref<1x128xf32, #tpu.memory_space<vmem>>, %arg5: memref<128x128xbf16, #tpu.memory_space<vmem>>, %arg6: memref<1x128xf32, #tpu.memory_space<vmem>>, %arg7: memref<128x128xbf16, #tpu.memory_space<vmem>>, %arg8: memref<1x128xf32, #tpu.memory_space<vmem>>, %arg9: memref<16x128xbf16, #tpu.memory_space<vmem>>) attributes {dimension_semantics = [#tpu.dimension_semantics<parallel>], iteration_bounds = array<i64: 1>, scalar_prefetch = 0 : i64, scratch_operands = 0 : i64, tpu.core_type = #tpu.core_type<tc>, window_params = [{transform_indices = @transform_0, window_bounds = array<i64: 2>}, {transform_indices = @transform_1, window_bounds = array<i64: 16, 16>}, {pipeline_mode = #tpu.pipeline_mode<synchronous>, transform_indices = @transform_2, window_bounds = array<i64: 16, 128>}, {pipeline_mode = #tpu.pipeline_mode<synchronous>, transform_indices = @transform_3, window_bounds = array<i64: 1, 128>}, {pipeline_mode = #tpu.pipeline_mode<synchronous>, transform_indices = @transform_4, window_bounds = array<i64: 128, 128>}, {pipeline_mode = #tpu.pipeline_mode<synchronous>, transform_indices = @transform_5, window_bounds = array<i64: 1, 128>}, {pipeline_mode = #tpu.pipeline_mode<synchronous>, transform_indices = @transform_6, window_bounds = array<i64: 128, 128>}, {pipeline_mode = #tpu.pipeline_mode<synchronous>, transform_indices = @transform_7, window_bounds = array<i64: 1, 128>}, {transform_indices = @transform_8, window_bounds = array<i64: 16, 128>}]} {
    %c0 = arith.constant 0 : index
    %c0_0 = arith.constant 0 : index
    %0 = vector.load %arg2[%c0, %c0_0] : memref<16x16xf32, #tpu.memory_space<vmem>>, vector<16x16xf32>
    %1 = arith.truncf %0 : vector<16x16xf32> to vector<16x16xbf16>
    %c0_1 = arith.constant 0 : index
    %c0_2 = arith.constant 0 : index
    %2 = vector.load %arg3[%c0_1, %c0_2] : memref<16x128xbf16, #tpu.memory_space<vmem>>, vector<16x128xbf16>
    %cst = arith.constant dense<0.000000e+00> : vector<16x128xf32>
    %3 = tpu.matmul %1, %2, %cst {dimension_numbers = #tpu.dot_dimension_numbers<[1], [0], [0], [1], [0, 0, 1, 1], [], []>} : vector<16x16xbf16>, vector<16x128xbf16>, vector<16x128xf32> -> vector<16x128xf32>
    %c0_3 = arith.constant 0 : index
    %c0_4 = arith.constant 0 : index
    %4 = vector.load %arg4[%c0_3, %c0_4] : memref<1x128xf32, #tpu.memory_space<vmem>>, vector<1x128xf32>
    %5 = vector.broadcast %4 : vector<1x128xf32> to vector<16x128xf32>
    %6 = arith.addf %3, %5 : vector<16x128xf32>
    %cst_5 = arith.constant 0.000000e+00 : f32
    %7 = vector.broadcast %cst_5 : f32 to vector<16x128xf32>
    %8 = arith.cmpf ogt, %6, %7 : vector<16x128xf32>
    %c0_6 = arith.constant 0 : index
    %9 = memref.load %arg1[%c0_6] : memref<2xf32, #tpu.memory_space<smem>>
    %10 = vector.broadcast %9 : f32 to vector<16x128xf32>
    %11 = arith.mulf %10, %6 : vector<16x128xf32>
    %12 = arith.select %8, %6, %11 : vector<16x128xi1>, vector<16x128xf32>
    %13 = arith.truncf %12 : vector<16x128xf32> to vector<16x128xbf16>
    %c0_7 = arith.constant 0 : index
    %c0_8 = arith.constant 0 : index
    %14 = vector.load %arg5[%c0_7, %c0_8] : memref<128x128xbf16, #tpu.memory_space<vmem>>, vector<128x128xbf16>
    %cst_9 = arith.constant dense<0.000000e+00> : vector<16x128xf32>
    %15 = tpu.matmul %13, %14, %cst_9 {dimension_numbers = #tpu.dot_dimension_numbers<[1], [0], [0], [1], [0, 0, 1, 1], [], []>} : vector<16x128xbf16>, vector<128x128xbf16>, vector<16x128xf32> -> vector<16x128xf32>
    %c0_10 = arith.constant 0 : index
    %c0_11 = arith.constant 0 : index
    %16 = vector.load %arg6[%c0_10, %c0_11] : memref<1x128xf32, #tpu.memory_space<vmem>>, vector<1x128xf32>
    %17 = vector.broadcast %16 : vector<1x128xf32> to vector<16x128xf32>
    %18 = arith.addf %15, %17 : vector<16x128xf32>
    %cst_12 = arith.constant 0.000000e+00 : f32
    %19 = vector.broadcast %cst_12 : f32 to vector<16x128xf32>
    %20 = arith.cmpf ogt, %18, %19 : vector<16x128xf32>
    %c1 = arith.constant 1 : index
    %21 = memref.load %arg1[%c1] : memref<2xf32, #tpu.memory_space<smem>>
    %22 = vector.broadcast %21 : f32 to vector<16x128xf32>
    %23 = arith.mulf %22, %18 : vector<16x128xf32>
    %24 = arith.select %20, %18, %23 : vector<16x128xi1>, vector<16x128xf32>
    %25 = arith.truncf %24 : vector<16x128xf32> to vector<16x128xbf16>
    %c0_13 = arith.constant 0 : index
    %c0_14 = arith.constant 0 : index
    %26 = vector.load %arg7[%c0_13, %c0_14] : memref<128x128xbf16, #tpu.memory_space<vmem>>, vector<128x128xbf16>
    %cst_15 = arith.constant dense<0.000000e+00> : vector<16x128xf32>
    %27 = tpu.matmul %25, %26, %cst_15 {dimension_numbers = #tpu.dot_dimension_numbers<[1], [0], [0], [1], [0, 0, 1, 1], [], []>} : vector<16x128xbf16>, vector<128x128xbf16>, vector<16x128xf32> -> vector<16x128xf32>
    %c0_16 = arith.constant 0 : index
    %c0_17 = arith.constant 0 : index
    %28 = vector.load %arg8[%c0_16, %c0_17] : memref<1x128xf32, #tpu.memory_space<vmem>>, vector<1x128xf32>
    %29 = vector.broadcast %28 : vector<1x128xf32> to vector<16x128xf32>
    %30 = arith.addf %27, %29 : vector<16x128xf32>
    %31 = arith.truncf %30 : vector<16x128xf32> to vector<16x128xbf16>
    %c0_18 = arith.constant 0 : index
    %c0_19 = arith.constant 0 : index
    %32 = vector.load %arg9[%c0_18, %c0_19] : memref<16x128xbf16, #tpu.memory_space<vmem>>, vector<16x128xbf16>
    tpu.vector_store %arg9[%c0_18, %c0_19], %31 {strides = array<i32>} : memref<16x128xbf16, #tpu.memory_space<vmem>>, vector<16x128xbf16>,
    return
  }
  func.func @transform_0(%arg0: i32) -> i32 {
    %c0_i32 = arith.constant 0 : i32
    %c0_i32_0 = arith.constant 0 : i32
    return %c0_i32 : i32
  }
  func.func @transform_1(%arg0: i32) -> (i32, i32) {
    %c0_i32 = arith.constant 0 : i32
    %c0_i32_0 = arith.constant 0 : i32
    return %arg0, %c0_i32 : i32, i32
  }
  func.func @transform_2(%arg0: i32) -> (i32, i32) {
    %c0_i32 = arith.constant 0 : i32
    %c0_i32_0 = arith.constant 0 : i32
    %c0_i32_1 = arith.constant 0 : i32
    return %c0_i32, %c0_i32_0 : i32, i32
  }
  func.func @transform_3(%arg0: i32) -> (i32, i32) {
    %c0_i32 = arith.constant 0 : i32
    %c0_i32_0 = arith.constant 0 : i32
    %c0_i32_1 = arith.constant 0 : i32
    return %c0_i32, %c0_i32_0 : i32, i32
  }
  func.func @transform_4(%arg0: i32) -> (i32, i32) {
    %c0_i32 = arith.constant 0 : i32
    %c0_i32_0 = arith.constant 0 : i32
    %c0_i32_1 = arith.constant 0 : i32
    return %c0_i32, %c0_i32_0 : i32, i32
  }
  func.func @transform_5(%arg0: i32) -> (i32, i32) {
    %c0_i32 = arith.constant 0 : i32
    %c0_i32_0 = arith.constant 0 : i32
    %c0_i32_1 = arith.constant 0 : i32
    return %c0_i32, %c0_i32_0 : i32, i32
  }
  func.func @transform_6(%arg0: i32) -> (i32, i32) {
    %c0_i32 = arith.constant 0 : i32
    %c0_i32_0 = arith.constant 0 : i32
    %c0_i32_1 = arith.constant 0 : i32
    return %c0_i32, %c0_i32_0 : i32, i32
  }
  func.func @transform_7(%arg0: i32) -> (i32, i32) {
    %c0_i32 = arith.constant 0 : i32
    %c0_i32_0 = arith.constant 0 : i32
    %c0_i32_1 = arith.constant 0 : i32
    return %c0_i32, %c0_i32_0 : i32, i32
  }
  func.func @transform_8(%arg0: i32) -> (i32, i32) {
    %c0_i32 = arith.constant 0 : i32
    %c0_i32_0 = arith.constant 0 : i32
    return %arg0, %c0_i32 : i32, i32
  }
}

module attributes {stable_mosaic.version = 11 : i64} {
  func.func @_actor_kernel(%arg0: i32, %arg1: memref<2xf32, #tpu.memory_space<smem>>, %arg2: memref<16x16xf32, #tpu.memory_space<vmem>>, %arg3: memref<16x128xbf16, #tpu.memory_space<vmem>>, %arg4: memref<1x128xf32, #tpu.memory_space<vmem>>, %arg5: memref<128x128xbf16, #tpu.memory_space<vmem>>, %arg6: memref<1x128xf32, #tpu.memory_space<vmem>>, %arg7: memref<128x128xbf16, #tpu.memory_space<vmem>>, %arg8: memref<1x128xf32, #tpu.memory_space<vmem>>, %arg9: memref<16x128xbf16, #tpu.memory_space<vmem>>) attributes {dimension_semantics = [#tpu.dimension_semantics<parallel>], iteration_bounds = array<i64: 1>, scalar_prefetch = 0 : i64, scratch_operands = 0 : i64, tpu.core_type = #tpu.core_type<tc>, window_params = [{transform_indices = @transform_0, window_bounds = array<i64: 2>}, {transform_indices = @transform_1, window_bounds = array<i64: 16, 16>}, {pipeline_mode = #tpu.pipeline_mode<synchronous>, transform_indices = @transform_2, window_bounds = array<i64: 16, 128>}, {pipeline_mode = #tpu.pipeline_mode<synchronous>, transform_indices = @transform_3, window_bounds = array<i64: 1, 128>}, {pipeline_mode = #tpu.pipeline_mode<synchronous>, transform_indices = @transform_4, window_bounds = array<i64: 128, 128>}, {pipeline_mode = #tpu.pipeline_mode<synchronous>, transform_indices = @transform_5, window_bounds = array<i64: 1, 128>}, {pipeline_mode = #tpu.pipeline_mode<synchronous>, transform_indices = @transform_6, window_bounds = array<i64: 128, 128>}, {pipeline_mode = #tpu.pipeline_mode<synchronous>, transform_indices = @transform_7, window_bounds = array<i64: 1, 128>}, {transform_indices = @transform_8, window_bounds = array<i64: 16, 128>}]} {
    %c0 = arith.constant 0 : index
    %c0_0 = arith.constant 0 : index
    %0 = vector.load %arg2[%c0, %c0_0] : memref<16x16xf32, #tpu.memory_space<vmem>>, vector<16x16xf32>
    %1 = arith.truncf %0 : vector<16x16xf32> to vector<16x16xbf16>
    %c0_1 = arith.constant 0 : index
    %c0_2 = arith.constant 0 : index
    %2 = vector.load %arg3[%c0_1, %c0_2] : memref<16x128xbf16, #tpu.memory_space<vmem>>, vector<16x128xbf16>
    %cst = arith.constant dense<0.000000e+00> : vector<16x128xf32>
    %3 = tpu.matmul %1, %2, %cst {dimension_numbers = #tpu.dot_dimension_numbers<[1], [0], [0], [1], [0, 0, 1, 1], [], []>} : vector<16x16xbf16>, vector<16x128xbf16>, vector<16x128xf32> -> vector<16x128xf32>
    %c0_3 = arith.constant 0 : index
    %c0_4 = arith.constant 0 : index
    %4 = vector.load %arg4[%c0_3, %c0_4] : memref<1x128xf32, #tpu.memory_space<vmem>>, vector<1x128xf32>
    %5 = vector.broadcast %4 : vector<1x128xf32> to vector<16x128xf32>
    %6 = arith.addf %3, %5 : vector<16x128xf32>
    %cst_5 = arith.constant 0.000000e+00 : f32
    %7 = vector.broadcast %cst_5 : f32 to vector<16x128xf32>
    %8 = arith.cmpf ogt, %6, %7 : vector<16x128xf32>
    %c0_6 = arith.constant 0 : index
    %9 = memref.load %arg1[%c0_6] : memref<2xf32, #tpu.memory_space<smem>>
    %10 = vector.broadcast %9 : f32 to vector<16x128xf32>
    %11 = arith.mulf %10, %6 : vector<16x128xf32>
    %12 = arith.select %8, %6, %11 : vector<16x128xi1>, vector<16x128xf32>
    %13 = arith.truncf %12 : vector<16x128xf32> to vector<16x128xbf16>
    %c0_7 = arith.constant 0 : index
    %c0_8 = arith.constant 0 : index
    %14 = vector.load %arg5[%c0_7, %c0_8] : memref<128x128xbf16, #tpu.memory_space<vmem>>, vector<128x128xbf16>
    %cst_9 = arith.constant dense<0.000000e+00> : vector<16x128xf32>
    %15 = tpu.matmul %13, %14, %cst_9 {dimension_numbers = #tpu.dot_dimension_numbers<[1], [0], [0], [1], [0, 0, 1, 1], [], []>} : vector<16x128xbf16>, vector<128x128xbf16>, vector<16x128xf32> -> vector<16x128xf32>
    %c0_10 = arith.constant 0 : index
    %c0_11 = arith.constant 0 : index
    %16 = vector.load %arg6[%c0_10, %c0_11] : memref<1x128xf32, #tpu.memory_space<vmem>>, vector<1x128xf32>
    %17 = vector.broadcast %16 : vector<1x128xf32> to vector<16x128xf32>
    %18 = arith.addf %15, %17 : vector<16x128xf32>
    %cst_12 = arith.constant 0.000000e+00 : f32
    %19 = vector.broadcast %cst_12 : f32 to vector<16x128xf32>
    %20 = arith.cmpf ogt, %18, %19 : vector<16x128xf32>
    %c1 = arith.constant 1 : index
    %21 = memref.load %arg1[%c1] : memref<2xf32, #tpu.memory_space<smem>>
    %22 = vector.broadcast %21 : f32 to vector<16x128xf32>
    %23 = arith.mulf %22, %18 : vector<16x128xf32>
    %24 = arith.select %20, %18, %23 : vector<16x128xi1>, vector<16x128xf32>
    %25 = arith.truncf %24 : vector<16x128xf32> to vector<16x128xbf16>
    %c0_13 = arith.constant 0 : index
    %c0_14 = arith.constant 0 : index
    %26 = vector.load %arg7[%c0_13, %c0_14] : memref<128x128xbf16, #tpu.memory_space<vmem>>, vector<128x128xbf16>
    %cst_15 = arith.constant dense<0.000000e+00> : vector<16x128xf32>
    %27 = tpu.matmul %25, %26, %cst_15 {dimension_numbers = #tpu.dot_dimension_numbers<[1], [0], [0], [1], [0, 0, 1, 1], [], []>} : vector<16x128xbf16>, vector<128x128xbf16>, vector<16x128xf32> -> vector<16x128xf32>
    %c0_16 = arith.constant 0 : index
    %c0_17 = arith.constant 0 : index
    %28 = vector.load %arg8[%c0_16, %c0_17] : memref<1x128xf32, #tpu.memory_space<vmem>>, vector<1x128xf32>
    %29 = vector.broadcast %28 : vector<1x128xf32> to vector<16x128xf32>
    %30 = arith.addf %27, %29 : vector<16x128xf32>
    %31 = arith.truncf %30 : vector<16x128xf32> to vector<16x128xbf16>
    %c0_18 = arith.constant 0 : index
    %c0_19 = arith.constant 0 : index
    %32 = vector.load %arg9[%c0_18, %c0_19] : memref<16x128xbf16, #tpu.memory_space<vmem>>, vector<16x128xbf16>
    tpu.vector_store %arg9[%c0_18, %c0_19], %31 {strides = array<i32>} : memref<16x128xbf16, #tpu.memory_space<vmem>>, vector<16x128xbf16>,
    return
  }
  func.func @transform_0(%arg0: i32) -> i32 {
    %c0_i32 = arith.constant 0 : i32
    %c0_i32_0 = arith.constant 0 : i32
    return %c0_i32 : i32
  }
  func.func @transform_1(%arg0: i32) -> (i32, i32) {
    %c0_i32 = arith.constant 0 : i32
    %c0_i32_0 = arith.constant 0 : i32
    return %arg0, %c0_i32 : i32, i32
  }
  func.func @transform_2(%arg0: i32) -> (i32, i32) {
    %c0_i32 = arith.constant 0 : i32
    %c0_i32_0 = arith.constant 0 : i32
    %c0_i32_1 = arith.constant 0 : i32
    return %c0_i32, %c0_i32_0 : i32, i32
  }
  func.func @transform_3(%arg0: i32) -> (i32, i32) {
    %c0_i32 = arith.constant 0 : i32
    %c0_i32_0 = arith.constant 0 : i32
    %c0_i32_1 = arith.constant 0 : i32
    return %c0_i32, %c0_i32_0 : i32, i32
  }
  func.func @transform_4(%arg0: i32) -> (i32, i32) {
    %c0_i32 = arith.constant 0 : i32
    %c0_i32_0 = arith.constant 0 : i32
    %c0_i32_1 = arith.constant 0 : i32
    return %c0_i32, %c0_i32_0 : i32, i32
  }
  func.func @transform_5(%arg0: i32) -> (i32, i32) {
    %c0_i32 = arith.constant 0 : i32
    %c0_i32_0 = arith.constant 0 : i32
    %c0_i32_1 = arith.constant 0 : i32
    return %c0_i32, %c0_i32_0 : i32, i32
  }
  func.func @transform_6(%arg0: i32) -> (i32, i32) {
    %c0_i32 = arith.constant 0 : i32
    %c0_i32_0 = arith.constant 0 : i32
    %c0_i32_1 = arith.constant 0 : i32
    return %c0_i32, %c0_i32_0 : i32, i32
  }
  func.func @transform_7(%arg0: i32) -> (i32, i32) {
    %c0_i32 = arith.constant 0 : i32
    %c0_i32_0 = arith.constant 0 : i32
    %c0_i32_1 = arith.constant 0 : i32
    return %c0_i32, %c0_i32_0 : i32, i32
  }
  func.func @transform_8(%arg0: i32) -> (i32, i32) {
    %c0_i32 = arith.constant 0 : i32
    %c0_i32_0 = arith.constant 0 : i32
    return %arg0, %c0_i32 : i32, i32
  }
}

</mosaic_0001>

<llo_original>
// kernel: tpu_custom_call.1
$region0: #{tpu_custom_call.1}
  #allocation0 [shape = 'u32[]', space=smem, size = 0x4, offset = 0x4, fixed_abs, tag = 'smem constant byte address 0x4 - core index']
  #allocation1 [shape = 'u32[144,128]{1,0:T(1,128)}', space=vmem, size = 0x12000, scoped, tag = 'internal scratch']
  %s0 = inlined_call_operand.hbm [shape: f32[2], index: 0, kind: input, shape index: {}]
  %s1 = inlined_call_operand.hbm [shape: f32[16,16], index: 1, kind: input, shape index: {}]
  %s2 = inlined_call_operand.hbm [shape: bf16[16,128], index: 2, kind: input, shape index: {}]
  %s3 = inlined_call_operand.vmem [shape: f32[1,128], index: 3, kind: input, shape index: {}]
  %s4 = inlined_call_operand.hbm [shape: bf16[128,128], index: 4, kind: input, shape index: {}]
  %s5 = inlined_call_operand.vmem [shape: f32[1,128], index: 5, kind: input, shape index: {}]
  %s6 = inlined_call_operand.hbm [shape: bf16[128,128], index: 6, kind: input, shape index: {}]
  %s7 = inlined_call_operand.vmem [shape: f32[1,128], index: 7, kind: input, shape index: {}]
  %s8 = inlined_call_operand.hbm [shape: bf16[16,128], index: 8, kind: output, shape index: {}]
  %s9 = sld [smem:[#allocation0]]
  $region62: #{tpu_custom_call.1} parent=0
    _
  %s11 = ssub.s32 1, %s9
  %s12 = scalar_select 0, %s11, %s9
  $region1: #{tpu_custom_call.1} parent=0
    #allocation2 [shape = 'u8[512]{0}', space=smem, size = 0x200, scoped, tag = 'input window, operand 0, single buffered']
    #allocation3 [shape = 's32[1]{0}', space=sflag, size = 0x4, scoped, tag = 'scoped memory for tpu_custom_call.1']
    #allocation4 [shape = 's32[1]{0}', space=sflag, size = 0x4, scoped, tag = 'scoped memory for tpu_custom_call.1']
    #allocation5 [shape = 's32[1]{0}', space=sflag, size = 0x4, scoped, tag = 'scoped memory for tpu_custom_call.1']
    #allocation6 [shape = 'u8[8192]{0}', space=vmem, size = 0x2000, scoped, tag = 'input window, operand 1, single buffered']
    #allocation7 [shape = 'u8[4096]{0}', space=vmem, size = 0x1000, scoped, tag = 'input window, operand 2, single buffered']
    #allocation8 [shape = 's32[1]{0}', space=sflag, size = 0x4, scoped, tag = 'scoped memory for tpu_custom_call.1']
    #allocation9 [shape = 'u8[32768]{0}', space=vmem, size = 0x8000, scoped, tag = 'input window, operand 4, single buffered']
    #allocation10 [shape = 'u8[32768]{0}', space=vmem, size = 0x8000, scoped, tag = 'input window, operand 6, single buffered']
    #allocation11 [shape = 's32[1]{0}', space=sflag, size = 0x4, scoped, tag = 'scoped memory for tpu_custom_call.1']
    #allocation12 [shape = 'u8[4096]{0}', space=vmem, size = 0x1000, scoped, tag = 'output window, operand 0, single buffered']
    %13 = vsyncpa [#allocation5], 0
    %14 = vsyncpa [#allocation3], 0
    %15 = vsyncpa [#allocation8], 0
    %16 = vsyncpa [#allocation11], 0
    %17 = vsyncpa [#allocation4], 0
    // Predicated region
    $region2: #{tpu_custom_call.1} parent=1 // pred_check
      _
    $region3: #{tpu_custom_call.1} parent=1 // pred_check_branch
      %19 = sbr.rel (0) target = $region5
    $region4: #{tpu_custom_call.1} parent=1 // pred_region
      %s21 = ssub.s32 16, 16
      %22 = vsyncadd [#allocation5], %s21
      %25 = dma.hbm_to_smem %s0, 16, [#allocation2], [#allocation5]
    $region5: #{tpu_custom_call.1} parent=1 // pred_fallthru
      _
    // Predicated region
    $region6: #{tpu_custom_call.1} parent=1 // pred_check
      _
    $region7: #{tpu_custom_call.1} parent=1 // pred_check_branch
      %27 = sbr.rel (0) target = $region9
    $region8: #{tpu_custom_call.1} parent=1 // pred_region
      %s29 = ssub.s32 256, 256
      %30 = vsyncadd [#allocation3], %s29
      %s31 = sshll.u32 [#allocation6], 4
      %s32 = int_to_ptr.vmem [resolvable:$true] %s31
      %37 = dma.hbm_to_vmem [thread:$0]  %s1, 256, %s32, [#allocation3], 128, 128, 8
    $region9: #{tpu_custom_call.1} parent=1 // pred_fallthru
      _
    // Predicated region
    $region10: #{tpu_custom_call.1} parent=1 // pred_check
      _
    $region11: #{tpu_custom_call.1} parent=1 // pred_check_branch
      %39 = sbr.rel (0) target = $region13
    $region12: #{tpu_custom_call.1} parent=1 // pred_region
      %s41 = ssub.s32 128, 128
      %42 = vsyncadd [#allocation8], %s41
      %s43 = sshll.u32 [#allocation7], 4
      %s44 = int_to_ptr.vmem [resolvable:$true] %s43
      %49 = dma.hbm_to_vmem [thread:$0]  %s2, 128, %s44, [#allocation8], 64, 64, 4
    $region13: #{tpu_custom_call.1} parent=1 // pred_fallthru
      _
    // Predicated region
    $region14: #{tpu_custom_call.1} parent=1 // pred_check
      _
    $region15: #{tpu_custom_call.1} parent=1 // pred_check_branch
      %51 = sbr.rel (0) target = $region17
    $region16: #{tpu_custom_call.1} parent=1 // pred_region
      _
    $region17: #{tpu_custom_call.1} parent=1 // pred_fallthru
      _
    // Predicated region
    $region18: #{tpu_custom_call.1} parent=1 // pred_check
      _
    $region19: #{tpu_custom_call.1} parent=1 // pred_check_branch
      %53 = sbr.rel (0) target = $region21
    $region20: #{tpu_custom_call.1} parent=1 // pred_region
      %s55 = ssub.s32 1024, 1024
      %56 = vsyncadd [#allocation8], %s55
      %s57 = sshll.u32 [#allocation9], 4
      %s58 = int_to_ptr.vmem [resolvable:$true] %s57
      %63 = dma.hbm_to_vmem [thread:$0]  %s4, 1024, %s58, [#allocation8], 64, 64, 4
    $region21: #{tpu_custom_call.1} parent=1 // pred_fallthru
      _
    // Predicated region
    $region22: #{tpu_custom_call.1} parent=1 // pred_check
      _
    $region23: #{tpu_custom_call.1} parent=1 // pred_check_branch
      %65 = sbr.rel (0) target = $region25
    $region24: #{tpu_custom_call.1} parent=1 // pred_region
      _
    $region25: #{tpu_custom_call.1} parent=1 // pred_fallthru
      _
    // Predicated region
    $region26: #{tpu_custom_call.1} parent=1 // pred_check
      _
    $region27: #{tpu_custom_call.1} parent=1 // pred_check_branch
      %67 = sbr.rel (0) target = $region29
    $region28: #{tpu_custom_call.1} parent=1 // pred_region
      %s69 = ssub.s32 1024, 1024
      %70 = vsyncadd [#allocation11], %s69
      %s71 = sshll.u32 [#allocation10], 4
      %s72 = int_to_ptr.vmem [resolvable:$true] %s71
      %77 = dma.hbm_to_vmem [thread:$0]  %s6, 1024, %s72, [#allocation11], 64, 64, 4
    $region29: #{tpu_custom_call.1} parent=1 // pred_fallthru
      _
    // Predicated region
    $region30: #{tpu_custom_call.1} parent=1 // pred_check
      _
    $region31: #{tpu_custom_call.1} parent=1 // pred_check_branch
      %79 = sbr.rel (0) target = $region33
    $region32: #{tpu_custom_call.1} parent=1 // pred_region
      _
    $region33: #{tpu_custom_call.1} parent=1 // pred_fallthru
      _
    // Predicated region
    $region34: #{tpu_custom_call.1} parent=1 // pred_check
      _
    $region35: #{tpu_custom_call.1} parent=1 // pred_check_branch
      %81 = sbr.rel (0) target = $region37
    $region36: #{tpu_custom_call.1} parent=1 // pred_region
      %82 = dma.done [#allocation5], 16
    $region37: #{tpu_custom_call.1} parent=1 // pred_fallthru
      _
    // Predicated region
    $region38: #{tpu_custom_call.1} parent=1 // pred_check
      _
    $region39: #{tpu_custom_call.1} parent=1 // pred_check_branch
      %84 = sbr.rel (0) target = $region41
    $region40: #{tpu_custom_call.1} parent=1 // pred_region
      %85 = dma.done [#allocation3], 256
    $region41: #{tpu_custom_call.1} parent=1 // pred_fallthru
      _
    // Predicated region
    $region42: #{tpu_custom_call.1} parent=1 // pred_check
      _
    $region43: #{tpu_custom_call.1} parent=1 // pred_check_branch
      %87 = sbr.rel (0) target = $region45
    $region44: #{tpu_custom_call.1} parent=1 // pred_region
      %88 = dma.done [#allocation8], 128
    $region45: #{tpu_custom_call.1} parent=1 // pred_fallthru
      _
    // Predicated region
    $region46: #{tpu_custom_call.1} parent=1 // pred_check
      _
    $region47: #{tpu_custom_call.1} parent=1 // pred_check_branch
      %90 = sbr.rel (0) target = $region49
    $region48: #{tpu_custom_call.1} parent=1 // pred_region
      %91 = dma.done [#allocation8], 1024
    $region49: #{tpu_custom_call.1} parent=1 // pred_fallthru
      _
    // Predicated region
    $region50: #{tpu_custom_call.1} parent=1 // pred_check
      _
    $region51: #{tpu_custom_call.1} parent=1 // pred_check_branch
      %93 = sbr.rel (0) target = $region53
    $region52: #{tpu_custom_call.1} parent=1 // pred_region
      %94 = dma.done [#allocation11], 1024
    $region53: #{tpu_custom_call.1} parent=1 // pred_fallthru
      _
    %95 = sfence
    %v97 = vld [vmem:[#allocation6] sm:$0xff]
    %v98 = vld [vmem:[#allocation6 + $0x8] sm:$0xff]
    %v99 = vpack.c.bf16 %v98, %v97
    %v100 = vld [vmem:[#allocation7] sm:$0xf]
    %v101 = vld [vmem:[#allocation7 + $0x4] sm:$0xf]
    %v102 = vld [vmem:[%s3] sm:$0x1]
    %v104 = vlaneseq
    %v105 = vshrl.u32 %v104, 7
    %v106 = vsub.s32 0, %v105
    %v107 = vrot.slane %v102, %v106
    %v111 = vunpack.c.l.b16 %v100
    %v112 = vunpack.c.l.b16 %v101
    %v113 = vpack.c.b16 %v112, %v111
    %vm115 = vcmask 130048
    %v117 = vsel %vm115, %v99, 0
    %119 = vmatprep.subr.bf16.mxu0 0
    %120 = vmatpush1.bf16.msra.mxu0 0
    %121 = vmatprep.subr.bf16.mxu0 0
    %122 = vmatpush1.bf16.msra.mxu0 0
    %123 = vmatprep.subr.bf16.mxu0 0
    %124 = vmatpush1.bf16.msra.mxu0 0
    %125 = vmatprep.subr.bf16.mxu0 0
    %126 = vmatpush1.bf16.msra.mxu0 0
    %127 = vmatprep.subr.bf16.mxu0 0
    %128 = vmatpush1.bf16.msra.mxu0 0
    %129 = vmatprep.subr.bf16.mxu0 0
    %130 = vmatpush1.bf16.msra.mxu0 0
    %131 = vmatprep.subr.bf16.mxu0 0
    %132 = vmatpush1.bf16.msra.mxu0 0
    %133 = vmatprep.subr.bf16.mxu0 0
    %134 = vmatpush1.bf16.msra.mxu0 %v113
    %135 = vmatprep.subr.bf16.mxu0 0
    %136 = vmatpush2.bf16.msra.mxu0 0
    %137 = vmatprep.subr.bf16.mxu0 0
    %138 = vmatpush2.bf16.msra.mxu0 0
    %139 = vmatprep.subr.bf16.mxu0 0
    %140 = vmatpush2.bf16.msra.mxu0 0
    %141 = vmatprep.subr.bf16.mxu0 0
    %142 = vmatpush2.bf16.msra.mxu0 0
    %143 = vmatprep.subr.bf16.mxu0 0
    %144 = vmatpush2.bf16.msra.mxu0 0
    %145 = vmatprep.subr.bf16.mxu0 0
    %146 = vmatpush2.bf16.msra.mxu0 0
    %147 = vmatprep.subr.bf16.mxu0 0
    %148 = vmatpush2.bf16.msra.mxu0 0
    %149 = vmatprep.subr.bf16.mxu0 0
    %150 = vmatpush2.bf16.msra.mxu0 0
    %151 = vmatprep.mubr.bf16.mxu0 0
    %152 = vmatmul.mubr.bf16.gmra.mxu0 %v117
    %v153 = vpop.f32.mrf.mxu0
    %v154 = vadd.f32 %v107, %v153
    %v155 = vpop.f32.mrf.mxu0
    %v156 = vpop.f32.mrf.mxu0
    %v157 = vadd.f32 %v107, %v156
    %v158 = vpop.f32.mrf.mxu0
    %159 = vdwg.mxu0
    %vm160 = vcmp.gt.f32.partialorder %v154, 0.0
    %vm161 = vcmp.gt.f32.partialorder %v157, 0.0
    %s162 = sld [smem:[#allocation2]]
    %v163 = vstv %s162
    %v164 = vmul.f32 %v163, %v154
    %v165 = vmul.f32 %v163, %v157
    %v166 = vsel %vm160, %v154, %v164
    %v167 = vsel %vm161, %v157, %v165
    %v168 = vpack.c.bf16 %v167, %v166
    %v169 = vld [vmem:[#allocation9] sm:$0xf]
    %v170 = vld [vmem:[#allocation9 + $0x4] sm:$0xf]
    %v171 = vld [vmem:[#allocation9 + $0x8] sm:$0xf]
    %v172 = vld [vmem:[#allocation9 + $0xc] sm:$0xf]
    %v173 = vld [vmem:[#allocation9 + $0x10] sm:$0xf]
    %v174 = vld [vmem:[#allocation9 + $0x14] sm:$0xf]
    %v175 = vld [vmem:[#allocation9 + $0x18] sm:$0xf]
    %v176 = vld [vmem:[#allocation9 + $0x1c] sm:$0xf]
    %v177 = vld [vmem:[#allocation9 + $0x20] sm:$0xf]
    %v178 = vld [vmem:[#allocation9 + $0x24] sm:$0xf]
    %v179 = vld [vmem:[#allocation9 + $0x28] sm:$0xf]
    %v180 = vld [vmem:[#allocation9 + $0x2c] sm:$0xf]
    %v181 = vld [vmem:[#allocation9 + $0x30] sm:$0xf]
    %v182 = vld [vmem:[#allocation9 + $0x34] sm:$0xf]
    %v183 = vld [vmem:[#allocation9 + $0x38] sm:$0xf]
    %v184 = vld [vmem:[#allocation9 + $0x3c] sm:$0xf]
    %v185 = vld [vmem:[%s5] sm:$0x1]
    %v187 = vlaneseq
    %v188 = vshrl.u32 %v187, 7
    %v189 = vsub.s32 0, %v188
    %v190 = vrot.slane %v185, %v189
    %v208 = vunpack.c.l.b16 %v169
    %v209 = vunpack.c.l.b16 %v170
    %v210 = vunpack.c.l.b16 %v171
    %v211 = vunpack.c.l.b16 %v172
    %v212 = vunpack.c.l.b16 %v173
    %v213 = vunpack.c.l.b16 %v174
    %v214 = vunpack.c.l.b16 %v175
    %v215 = vunpack.c.l.b16 %v176
    %v216 = vunpack.c.l.b16 %v177
    %v217 = vunpack.c.l.b16 %v178
    %v218 = vunpack.c.l.b16 %v179
    %v219 = vunpack.c.l.b16 %v180
    %v220 = vunpack.c.l.b16 %v181
    %v221 = vunpack.c.l.b16 %v182
    %v222 = vunpack.c.l.b16 %v183
    %v223 = vunpack.c.l.b16 %v184
    %v224 = vpack.c.b16 %v209, %v208
    %v225 = vpack.c.b16 %v211, %v210
    %v226 = vpack.c.b16 %v213, %v212
    %v227 = vpack.c.b16 %v215, %v214
    %v228 = vpack.c.b16 %v217, %v216
    %v229 = vpack.c.b16 %v219, %v218
    %v230 = vpack.c.b16 %v221, %v220
    %v231 = vpack.c.b16 %v223, %v222
    %240 = vmatprep.subr.bf16.mxu0 0
    %241 = vmatpush1.bf16.msra.mxu0 %v231
    %242 = vmatprep.subr.bf16.mxu0 0
    %243 = vmatpush1.bf16.msra.mxu0 %v230
    %244 = vmatprep.subr.bf16.mxu0 0
    %245 = vmatpush1.bf16.msra.mxu0 %v229
    %246 = vmatprep.subr.bf16.mxu0 0
    %247 = vmatpush1.bf16.msra.mxu0 %v228
    %248 = vmatprep.subr.bf16.mxu0 0
    %249 = vmatpush1.bf16.msra.mxu0 %v227
    %250 = vmatprep.subr.bf16.mxu0 0
    %251 = vmatpush1.bf16.msra.mxu0 %v226
    %252 = vmatprep.subr.bf16.mxu0 0
    %253 = vmatpush1.bf16.msra.mxu0 %v225
    %254 = vmatprep.subr.bf16.mxu0 0
    %255 = vmatpush1.bf16.msra.mxu0 %v224
    %256 = vmatprep.subr.bf16.mxu0 0
    %257 = vmatpush2.bf16.msra.mxu0 0
    %258 = vmatprep.subr.bf16.mxu0 0
    %259 = vmatpush2.bf16.msra.mxu0 0
    %260 = vmatprep.subr.bf16.mxu0 0
    %261 = vmatpush2.bf16.msra.mxu0 0
    %262 = vmatprep.subr.bf16.mxu0 0
    %263 = vmatpush2.bf16.msra.mxu0 0
    %264 = vmatprep.subr.bf16.mxu0 0
    %265 = vmatpush2.bf16.msra.mxu0 0
    %266 = vmatprep.subr.bf16.mxu0 0
    %267 = vmatpush2.bf16.msra.mxu0 0
    %268 = vmatprep.subr.bf16.mxu0 0
    %269 = vmatpush2.bf16.msra.mxu0 0
    %270 = vmatprep.subr.bf16.mxu0 0
    %271 = vmatpush2.bf16.msra.mxu0 0
    %272 = vmatprep.mubr.bf16.mxu0 0
    %273 = vmatmul.mubr.bf16.gmra.mxu0 %v168
    %v274 = vpop.f32.mrf.mxu0
    %v275 = vadd.f32 %v190, %v274
    %v276 = vpop.f32.mrf.mxu0
    %v277 = vpop.f32.mrf.mxu0
    %v278 = vadd.f32 %v190, %v277
    %v279 = vpop.f32.mrf.mxu0
    %280 = vdwg.mxu0
    %vm281 = vcmp.gt.f32.partialorder %v275, 0.0
    %vm282 = vcmp.gt.f32.partialorder %v278, 0.0
    %s283 = sld [smem:[#allocation2 + $0x1]]
    %v284 = vstv %s283
    %v285 = vmul.f32 %v284, %v275
    %v286 = vmul.f32 %v284, %v278
    %v287 = vsel %vm281, %v275, %v285
    %v288 = vsel %vm282, %v278, %v286
    %v289 = vpack.c.bf16 %v288, %v287
    %v290 = vld [vmem:[#allocation10] sm:$0xf]
    %v291 = vld [vmem:[#allocation10 + $0x4] sm:$0xf]
    %v292 = vld [vmem:[#allocation10 + $0x8] sm:$0xf]
    %v293 = vld [vmem:[#allocation10 + $0xc] sm:$0xf]
    %v294 = vld [vmem:[#allocation10 + $0x10] sm:$0xf]
    %v295 = vld [vmem:[#allocation10 + $0x14] sm:$0xf]
    %v296 = vld [vmem:[#allocation10 + $0x18] sm:$0xf]
    %v297 = vld [vmem:[#allocation10 + $0x1c] sm:$0xf]
    %v298 = vld [vmem:[#allocation10 + $0x20] sm:$0xf]
    %v299 = vld [vmem:[#allocation10 + $0x24] sm:$0xf]
    %v300 = vld [vmem:[#allocation10 + $0x28] sm:$0xf]
    %v301 = vld [vmem:[#allocation10 + $0x2c] sm:$0xf]
    %v302 = vld [vmem:[#allocation10 + $0x30] sm:$0xf]
    %v303 = vld [vmem:[#allocation10 + $0x34] sm:$0xf]
    %v304 = vld [vmem:[#allocation10 + $0x38] sm:$0xf]
    %v305 = vld [vmem:[#allocation10 + $0x3c] sm:$0xf]
    %v306 = vld [vmem:[%s7] sm:$0x1]
    %v308 = vlaneseq
    %v309 = vshrl.u32 %v308, 7
    %v310 = vsub.s32 0, %v309
    %v311 = vrot.slane %v306, %v310
    %v329 = vunpack.c.l.b16 %v290
    %v330 = vunpack.c.l.b16 %v291
    %v331 = vunpack.c.l.b16 %v292
    %v332 = vunpack.c.l.b16 %v293
    %v333 = vunpack.c.l.b16 %v294
    %v334 = vunpack.c.l.b16 %v295
    %v335 = vunpack.c.l.b16 %v296
    %v336 = vunpack.c.l.b16 %v297
    %v337 = vunpack.c.l.b16 %v298
    %v338 = vunpack.c.l.b16 %v299
    %v339 = vunpack.c.l.b16 %v300
    %v340 = vunpack.c.l.b16 %v301
    %v341 = vunpack.c.l.b16 %v302
    %v342 = vunpack.c.l.b16 %v303
    %v343 = vunpack.c.l.b16 %v304
    %v344 = vunpack.c.l.b16 %v305
    %v345 = vpack.c.b16 %v330, %v329
    %v346 = vpack.c.b16 %v332, %v331
    %v347 = vpack.c.b16 %v334, %v333
    %v348 = vpack.c.b16 %v336, %v335
    %v349 = vpack.c.b16 %v338, %v337
    %v350 = vpack.c.b16 %v340, %v339
    %v351 = vpack.c.b16 %v342, %v341
    %v352 = vpack.c.b16 %v344, %v343
    %361 = vmatprep.subr.bf16.mxu0 0
    %362 = vmatpush1.bf16.msra.mxu0 %v352
    %363 = vmatprep.subr.bf16.mxu0 0
    %364 = vmatpush1.bf16.msra.mxu0 %v351
    %365 = vmatprep.subr.bf16.mxu0 0
    %366 = vmatpush1.bf16.msra.mxu0 %v350
    %367 = vmatprep.subr.bf16.mxu0 0
    %368 = vmatpush1.bf16.msra.mxu0 %v349
    %369 = vmatprep.subr.bf16.mxu0 0
    %370 = vmatpush1.bf16.msra.mxu0 %v348
    %371 = vmatprep.subr.bf16.mxu0 0
    %372 = vmatpush1.bf16.msra.mxu0 %v347
    %373 = vmatprep.subr.bf16.mxu0 0
    %374 = vmatpush1.bf16.msra.mxu0 %v346
    %375 = vmatprep.subr.bf16.mxu0 0
    %376 = vmatpush1.bf16.msra.mxu0 %v345
    %377 = vmatprep.subr.bf16.mxu0 0
    %378 = vmatpush2.bf16.msra.mxu0 0
    %379 = vmatprep.subr.bf16.mxu0 0
    %380 = vmatpush2.bf16.msra.mxu0 0
    %381 = vmatprep.subr.bf16.mxu0 0
    %382 = vmatpush2.bf16.msra.mxu0 0
    %383 = vmatprep.subr.bf16.mxu0 0
    %384 = vmatpush2.bf16.msra.mxu0 0
    %385 = vmatprep.subr.bf16.mxu0 0
    %386 = vmatpush2.bf16.msra.mxu0 0
    %387 = vmatprep.subr.bf16.mxu0 0
    %388 = vmatpush2.bf16.msra.mxu0 0
    %389 = vmatprep.subr.bf16.mxu0 0
    %390 = vmatpush2.bf16.msra.mxu0 0
    %391 = vmatprep.subr.bf16.mxu0 0
    %392 = vmatpush2.bf16.msra.mxu0 0
    %393 = vmatprep.mubr.bf16.mxu0 0
    %394 = vmatmul.mubr.bf16.gmra.mxu0 %v289
    %v395 = vpop.f32.mrf.mxu0
    %v396 = vadd.f32 %v311, %v395
    %v397 = vpop.f32.mrf.mxu0
    %v398 = vpop.f32.mrf.mxu0
    %v399 = vadd.f32 %v311, %v398
    %v400 = vpop.f32.mrf.mxu0
    %401 = vdwg.mxu0
    %v402 = vpack.c.bf16 %v399, %v396
    %v404 = vunpack.c.l.b16 %v402
    %v405 = vunpack.c.h.b16 %v402
    %v406 = vpack.c.b16 %v404, %v404
    %v407 = vpack.c.b16 %v405, %v405
    %410 = vst [vmem:[#allocation12] sm:$0xf] %v406
    %411 = vst [vmem:[#allocation12 + $0x4] sm:$0xf] %v407
    // Predicated region
    $region54: #{tpu_custom_call.1} parent=1 // pred_check
      _
    $region55: #{tpu_custom_call.1} parent=1 // pred_check_branch
      %413 = sbr.rel (0) target = $region57
    $region56: #{tpu_custom_call.1} parent=1 // pred_region
      %s415 = ssub.s32 128, 128
      %416 = vsyncadd [#allocation4], %s415
      %s417 = sshll.u32 [#allocation12], 4
      %s418 = int_to_ptr.vmem [resolvable:$true] %s417
      %423 = dma.vmem_to_hbm [thread:$0]  %s418, 128, %s8, [#allocation4], 64, 64, 4
    $region57: #{tpu_custom_call.1} parent=1 // pred_fallthru
      _
    // Predicated region
    $region58: #{tpu_custom_call.1} parent=1 // pred_check
      _
    $region59: #{tpu_custom_call.1} parent=1 // pred_check_branch
      %425 = sbr.rel (0) target = $region61
    $region60: #{tpu_custom_call.1} parent=1 // pred_region
      %426 = dma.done [#allocation4], 128
    $region61: #{tpu_custom_call.1} parent=1 // pred_fallthru
      _
    %427 = vsyncpa [#allocation3], 1
    %428 = vsyncpa [#allocation8], 1
    %429 = vsyncpa [#allocation11], 1
    %430 = vsyncpa [#allocation4], 1
    %431 = vsyncpa [#allocation5], 1

// kernel: tpu_custom_call.1
$region0: #{tpu_custom_call.1}
  #allocation0 [shape = 'u32[]', space=smem, size = 0x4, offset = 0x4, fixed_abs, tag = 'smem constant byte address 0x4 - core index']
  #allocation1 [shape = 'u32[144,128]{1,0:T(1,128)}', space=vmem, size = 0x12000, scoped, tag = 'internal scratch']
  %s0 = inlined_call_operand.hbm [shape: f32[2], index: 0, kind: input, shape index: {}]
  %s1 = inlined_call_operand.hbm [shape: f32[16,16], index: 1, kind: input, shape index: {}]
  %s2 = inlined_call_operand.hbm [shape: bf16[16,128], index: 2, kind: input, shape index: {}]
  %s3 = inlined_call_operand.vmem [shape: f32[1,128], index: 3, kind: input, shape index: {}]
  %s4 = inlined_call_operand.hbm [shape: bf16[128,128], index: 4, kind: input, shape index: {}]
  %s5 = inlined_call_operand.vmem [shape: f32[1,128], index: 5, kind: input, shape index: {}]
  %s6 = inlined_call_operand.hbm [shape: bf16[128,128], index: 6, kind: input, shape index: {}]
  %s7 = inlined_call_operand.vmem [shape: f32[1,128], index: 7, kind: input, shape index: {}]
  %s8 = inlined_call_operand.hbm [shape: bf16[16,128], index: 8, kind: output, shape index: {}]
  %s9 = sld [smem:[#allocation0]]
  $region62: #{tpu_custom_call.1} parent=0
    _
  %s11 = ssub.s32 1, %s9
  %s12 = scalar_select 0, %s11, %s9
  $region1: #{tpu_custom_call.1} parent=0
    #allocation2 [shape = 'u8[512]{0}', space=smem, size = 0x200, scoped, tag = 'input window, operand 0, single buffered']
    #allocation3 [shape = 's32[1]{0}', space=sflag, size = 0x4, scoped, tag = 'scoped memory for tpu_custom_call.1']
    #allocation4 [shape = 's32[1]{0}', space=sflag, size = 0x4, scoped, tag = 'scoped memory for tpu_custom_call.1']
    #allocation5 [shape = 's32[1]{0}', space=sflag, size = 0x4, scoped, tag = 'scoped memory for tpu_custom_call.1']
    #allocation6 [shape = 'u8[8192]{0}', space=vmem, size = 0x2000, scoped, tag = 'input window, operand 1, single buffered']
    #allocation7 [shape = 'u8[4096]{0}', space=vmem, size = 0x1000, scoped, tag = 'input window, operand 2, single buffered']
    #allocation8 [shape = 's32[1]{0}', space=sflag, size = 0x4, scoped, tag = 'scoped memory for tpu_custom_call.1']
    #allocation9 [shape = 'u8[32768]{0}', space=vmem, size = 0x8000, scoped, tag = 'input window, operand 4, single buffered']
    #allocation10 [shape = 'u8[32768]{0}', space=vmem, size = 0x8000, scoped, tag = 'input window, operand 6, single buffered']
    #allocation11 [shape = 's32[1]{0}', space=sflag, size = 0x4, scoped, tag = 'scoped memory for tpu_custom_call.1']
    #allocation12 [shape = 'u8[4096]{0}', space=vmem, size = 0x1000, scoped, tag = 'output window, operand 0, single buffered']
    %13 = vsyncpa [#allocation5], 0
    %14 = vsyncpa [#allocation3], 0
    %15 = vsyncpa [#allocation8], 0
    %16 = vsyncpa [#allocation11], 0
    %17 = vsyncpa [#allocation4], 0
    // Predicated region
    $region2: #{tpu_custom_call.1} parent=1 // pred_check
      _
    $region3: #{tpu_custom_call.1} parent=1 // pred_check_branch
      %19 = sbr.rel (0) target = $region5
    $region4: #{tpu_custom_call.1} parent=1 // pred_region
      %s21 = ssub.s32 16, 16
      %22 = vsyncadd [#allocation5], %s21
      %25 = dma.hbm_to_smem %s0, 16, [#allocation2], [#allocation5]
    $region5: #{tpu_custom_call.1} parent=1 // pred_fallthru
      _
    // Predicated region
    $region6: #{tpu_custom_call.1} parent=1 // pred_check
      _
    $region7: #{tpu_custom_call.1} parent=1 // pred_check_branch
      %27 = sbr.rel (0) target = $region9
    $region8: #{tpu_custom_call.1} parent=1 // pred_region
      %s29 = ssub.s32 256, 256
      %30 = vsyncadd [#allocation3], %s29
      %s31 = sshll.u32 [#allocation6], 4
      %s32 = int_to_ptr.vmem [resolvable:$true] %s31
      %37 = dma.hbm_to_vmem [thread:$0]  %s1, 256, %s32, [#allocation3], 128, 128, 8
    $region9: #{tpu_custom_call.1} parent=1 // pred_fallthru
      _
    // Predicated region
    $region10: #{tpu_custom_call.1} parent=1 // pred_check
      _
    $region11: #{tpu_custom_call.1} parent=1 // pred_check_branch
      %39 = sbr.rel (0) target = $region13
    $region12: #{tpu_custom_call.1} parent=1 // pred_region
      %s41 = ssub.s32 128, 128
      %42 = vsyncadd [#allocation8], %s41
      %s43 = sshll.u32 [#allocation7], 4
      %s44 = int_to_ptr.vmem [resolvable:$true] %s43
      %49 = dma.hbm_to_vmem [thread:$0]  %s2, 128, %s44, [#allocation8], 64, 64, 4
    $region13: #{tpu_custom_call.1} parent=1 // pred_fallthru
      _
    // Predicated region
    $region14: #{tpu_custom_call.1} parent=1 // pred_check
      _
    $region15: #{tpu_custom_call.1} parent=1 // pred_check_branch
      %51 = sbr.rel (0) target = $region17
    $region16: #{tpu_custom_call.1} parent=1 // pred_region
      _
    $region17: #{tpu_custom_call.1} parent=1 // pred_fallthru
      _
    // Predicated region
    $region18: #{tpu_custom_call.1} parent=1 // pred_check
      _
    $region19: #{tpu_custom_call.1} parent=1 // pred_check_branch
      %53 = sbr.rel (0) target = $region21
    $region20: #{tpu_custom_call.1} parent=1 // pred_region
      %s55 = ssub.s32 1024, 1024
      %56 = vsyncadd [#allocation8], %s55
      %s57 = sshll.u32 [#allocation9], 4
      %s58 = int_to_ptr.vmem [resolvable:$true] %s57
      %63 = dma.hbm_to_vmem [thread:$0]  %s4, 1024, %s58, [#allocation8], 64, 64, 4
    $region21: #{tpu_custom_call.1} parent=1 // pred_fallthru
      _
    // Predicated region
    $region22: #{tpu_custom_call.1} parent=1 // pred_check
      _
    $region23: #{tpu_custom_call.1} parent=1 // pred_check_branch
      %65 = sbr.rel (0) target = $region25
    $region24: #{tpu_custom_call.1} parent=1 // pred_region
      _
    $region25: #{tpu_custom_call.1} parent=1 // pred_fallthru
      _
    // Predicated region
    $region26: #{tpu_custom_call.1} parent=1 // pred_check
      _
    $region27: #{tpu_custom_call.1} parent=1 // pred_check_branch
      %67 = sbr.rel (0) target = $region29
    $region28: #{tpu_custom_call.1} parent=1 // pred_region
      %s69 = ssub.s32 1024, 1024
      %70 = vsyncadd [#allocation11], %s69
      %s71 = sshll.u32 [#allocation10], 4
      %s72 = int_to_ptr.vmem [resolvable:$true] %s71
      %77 = dma.hbm_to_vmem [thread:$0]  %s6, 1024, %s72, [#allocation11], 64, 64, 4
    $region29: #{tpu_custom_call.1} parent=1 // pred_fallthru
      _
    // Predicated region
    $region30: #{tpu_custom_call.1} parent=1 // pred_check
      _
    $region31: #{tpu_custom_call.1} parent=1 // pred_check_branch
      %79 = sbr.rel (0) target = $region33
    $region32: #{tpu_custom_call.1} parent=1 // pred_region
      _
    $region33: #{tpu_custom_call.1} parent=1 // pred_fallthru
      _
    // Predicated region
    $region34: #{tpu_custom_call.1} parent=1 // pred_check
      _
    $region35: #{tpu_custom_call.1} parent=1 // pred_check_branch
      %81 = sbr.rel (0) target = $region37
    $region36: #{tpu_custom_call.1} parent=1 // pred_region
      %82 = dma.done [#allocation5], 16
    $region37: #{tpu_custom_call.1} parent=1 // pred_fallthru
      _
    // Predicated region
    $region38: #{tpu_custom_call.1} parent=1 // pred_check
      _
    $region39: #{tpu_custom_call.1} parent=1 // pred_check_branch
      %84 = sbr.rel (0) target = $region41
    $region40: #{tpu_custom_call.1} parent=1 // pred_region
      %85 = dma.done [#allocation3], 256
    $region41: #{tpu_custom_call.1} parent=1 // pred_fallthru
      _
    // Predicated region
    $region42: #{tpu_custom_call.1} parent=1 // pred_check
      _
    $region43: #{tpu_custom_call.1} parent=1 // pred_check_branch
      %87 = sbr.rel (0) target = $region45
    $region44: #{tpu_custom_call.1} parent=1 // pred_region
      %88 = dma.done [#allocation8], 128
    $region45: #{tpu_custom_call.1} parent=1 // pred_fallthru
      _
    // Predicated region
    $region46: #{tpu_custom_call.1} parent=1 // pred_check
      _
    $region47: #{tpu_custom_call.1} parent=1 // pred_check_branch
      %90 = sbr.rel (0) target = $region49
    $region48: #{tpu_custom_call.1} parent=1 // pred_region
      %91 = dma.done [#allocation8], 1024
    $region49: #{tpu_custom_call.1} parent=1 // pred_fallthru
      _
    // Predicated region
    $region50: #{tpu_custom_call.1} parent=1 // pred_check
      _
    $region51: #{tpu_custom_call.1} parent=1 // pred_check_branch
      %93 = sbr.rel (0) target = $region53
    $region52: #{tpu_custom_call.1} parent=1 // pred_region
      %94 = dma.done [#allocation11], 1024
    $region53: #{tpu_custom_call.1} parent=1 // pred_fallthru
      _
    %95 = sfence
    %v97 = vld [vmem:[#allocation6] sm:$0xff]
    %v98 = vld [vmem:[#allocation6 + $0x8] sm:$0xff]
    %v99 = vpack.c.bf16 %v98, %v97
    %v100 = vld [vmem:[#allocation7] sm:$0xf]
    %v101 = vld [vmem:[#allocation7 + $0x4] sm:$0xf]
    %v102 = vld [vmem:[%s3] sm:$0x1]
    %v104 = vlaneseq
    %v105 = vshrl.u32 %v104, 7
    %v106 = vsub.s32 0, %v105
    %v107 = vrot.slane %v102, %v106
    %v111 = vunpack.c.l.b16 %v100
    %v112 = vunpack.c.l.b16 %v101
    %v113 = vpack.c.b16 %v112, %v111
    %vm115 = vcmask 130048
    %v117 = vsel %vm115, %v99, 0
    %119 = vmatprep.subr.bf16.mxu0 0
    %120 = vmatpush1.bf16.msra.mxu0 0
    %121 = vmatprep.subr.bf16.mxu0 0
    %122 = vmatpush1.bf16.msra.mxu0 0
    %123 = vmatprep.subr.bf16.mxu0 0
    %124 = vmatpush1.bf16.msra.mxu0 0
    %125 = vmatprep.subr.bf16.mxu0 0
    %126 = vmatpush1.bf16.msra.mxu0 0
    %127 = vmatprep.subr.bf16.mxu0 0
    %128 = vmatpush1.bf16.msra.mxu0 0
    %129 = vmatprep.subr.bf16.mxu0 0
    %130 = vmatpush1.bf16.msra.mxu0 0
    %131 = vmatprep.subr.bf16.mxu0 0
    %132 = vmatpush1.bf16.msra.mxu0 0
    %133 = vmatprep.subr.bf16.mxu0 0
    %134 = vmatpush1.bf16.msra.mxu0 %v113
    %135 = vmatprep.subr.bf16.mxu0 0
    %136 = vmatpush2.bf16.msra.mxu0 0
    %137 = vmatprep.subr.bf16.mxu0 0
    %138 = vmatpush2.bf16.msra.mxu0 0
    %139 = vmatprep.subr.bf16.mxu0 0
    %140 = vmatpush2.bf16.msra.mxu0 0
    %141 = vmatprep.subr.bf16.mxu0 0
    %142 = vmatpush2.bf16.msra.mxu0 0
    %143 = vmatprep.subr.bf16.mxu0 0
    %144 = vmatpush2.bf16.msra.mxu0 0
    %145 = vmatprep.subr.bf16.mxu0 0
    %146 = vmatpush2.bf16.msra.mxu0 0
    %147 = vmatprep.subr.bf16.mxu0 0
    %148 = vmatpush2.bf16.msra.mxu0 0
    %149 = vmatprep.subr.bf16.mxu0 0
    %150 = vmatpush2.bf16.msra.mxu0 0
    %151 = vmatprep.mubr.bf16.mxu0 0
    %152 = vmatmul.mubr.bf16.gmra.mxu0 %v117
    %v153 = vpop.f32.mrf.mxu0
    %v154 = vadd.f32 %v107, %v153
    %v155 = vpop.f32.mrf.mxu0
    %v156 = vpop.f32.mrf.mxu0
    %v157 = vadd.f32 %v107, %v156
    %v158 = vpop.f32.mrf.mxu0
    %159 = vdwg.mxu0
    %vm160 = vcmp.gt.f32.partialorder %v154, 0.0
    %vm161 = vcmp.gt.f32.partialorder %v157, 0.0
    %s162 = sld [smem:[#allocation2]]
    %v163 = vstv %s162
    %v164 = vmul.f32 %v163, %v154
    %v165 = vmul.f32 %v163, %v157
    %v166 = vsel %vm160, %v154, %v164
    %v167 = vsel %vm161, %v157, %v165
    %v168 = vpack.c.bf16 %v167, %v166
    %v169 = vld [vmem:[#allocation9] sm:$0xf]
    %v170 = vld [vmem:[#allocation9 + $0x4] sm:$0xf]
    %v171 = vld [vmem:[#allocation9 + $0x8] sm:$0xf]
    %v172 = vld [vmem:[#allocation9 + $0xc] sm:$0xf]
    %v173 = vld [vmem:[#allocation9 + $0x10] sm:$0xf]
    %v174 = vld [vmem:[#allocation9 + $0x14] sm:$0xf]
    %v175 = vld [vmem:[#allocation9 + $0x18] sm:$0xf]
    %v176 = vld [vmem:[#allocation9 + $0x1c] sm:$0xf]
    %v177 = vld [vmem:[#allocation9 + $0x20] sm:$0xf]
    %v178 = vld [vmem:[#allocation9 + $0x24] sm:$0xf]
    %v179 = vld [vmem:[#allocation9 + $0x28] sm:$0xf]
    %v180 = vld [vmem:[#allocation9 + $0x2c] sm:$0xf]
    %v181 = vld [vmem:[#allocation9 + $0x30] sm:$0xf]
    %v182 = vld [vmem:[#allocation9 + $0x34] sm:$0xf]
    %v183 = vld [vmem:[#allocation9 + $0x38] sm:$0xf]
    %v184 = vld [vmem:[#allocation9 + $0x3c] sm:$0xf]
    %v185 = vld [vmem:[%s5] sm:$0x1]
    %v187 = vlaneseq
    %v188 = vshrl.u32 %v187, 7
    %v189 = vsub.s32 0, %v188
    %v190 = vrot.slane %v185, %v189
    %v208 = vunpack.c.l.b16 %v169
    %v209 = vunpack.c.l.b16 %v170
    %v210 = vunpack.c.l.b16 %v171
    %v211 = vunpack.c.l.b16 %v172
    %v212 = vunpack.c.l.b16 %v173
    %v213 = vunpack.c.l.b16 %v174
    %v214 = vunpack.c.l.b16 %v175
    %v215 = vunpack.c.l.b16 %v176
    %v216 = vunpack.c.l.b16 %v177
    %v217 = vunpack.c.l.b16 %v178
    %v218 = vunpack.c.l.b16 %v179
    %v219 = vunpack.c.l.b16 %v180
    %v220 = vunpack.c.l.b16 %v181
    %v221 = vunpack.c.l.b16 %v182
    %v222 = vunpack.c.l.b16 %v183
    %v223 = vunpack.c.l.b16 %v184
    %v224 = vpack.c.b16 %v209, %v208
    %v225 = vpack.c.b16 %v211, %v210
    %v226 = vpack.c.b16 %v213, %v212
    %v227 = vpack.c.b16 %v215, %v214
    %v228 = vpack.c.b16 %v217, %v216
    %v229 = vpack.c.b16 %v219, %v218
    %v230 = vpack.c.b16 %v221, %v220
    %v231 = vpack.c.b16 %v223, %v222
    %240 = vmatprep.subr.bf16.mxu0 0
    %241 = vmatpush1.bf16.msra.mxu0 %v231
    %242 = vmatprep.subr.bf16.mxu0 0
    %243 = vmatpush1.bf16.msra.mxu0 %v230
    %244 = vmatprep.subr.bf16.mxu0 0
    %245 = vmatpush1.bf16.msra.mxu0 %v229
    %246 = vmatprep.subr.bf16.mxu0 0
    %247 = vmatpush1.bf16.msra.mxu0 %v228
    %248 = vmatprep.subr.bf16.mxu0 0
    %249 = vmatpush1.bf16.msra.mxu0 %v227
    %250 = vmatprep.subr.bf16.mxu0 0
    %251 = vmatpush1.bf16.msra.mxu0 %v226
    %252 = vmatprep.subr.bf16.mxu0 0
    %253 = vmatpush1.bf16.msra.mxu0 %v225
    %254 = vmatprep.subr.bf16.mxu0 0
    %255 = vmatpush1.bf16.msra.mxu0 %v224
    %256 = vmatprep.subr.bf16.mxu0 0
    %257 = vmatpush2.bf16.msra.mxu0 0
    %258 = vmatprep.subr.bf16.mxu0 0
    %259 = vmatpush2.bf16.msra.mxu0 0
    %260 = vmatprep.subr.bf16.mxu0 0
    %261 = vmatpush2.bf16.msra.mxu0 0
    %262 = vmatprep.subr.bf16.mxu0 0
    %263 = vmatpush2.bf16.msra.mxu0 0
    %264 = vmatprep.subr.bf16.mxu0 0
    %265 = vmatpush2.bf16.msra.mxu0 0
    %266 = vmatprep.subr.bf16.mxu0 0
    %267 = vmatpush2.bf16.msra.mxu0 0
    %268 = vmatprep.subr.bf16.mxu0 0
    %269 = vmatpush2.bf16.msra.mxu0 0
    %270 = vmatprep.subr.bf16.mxu0 0
    %271 = vmatpush2.bf16.msra.mxu0 0
    %272 = vmatprep.mubr.bf16.mxu0 0
    %273 = vmatmul.mubr.bf16.gmra.mxu0 %v168
    %v274 = vpop.f32.mrf.mxu0
    %v275 = vadd.f32 %v190, %v274
    %v276 = vpop.f32.mrf.mxu0
    %v277 = vpop.f32.mrf.mxu0
    %v278 = vadd.f32 %v190, %v277
    %v279 = vpop.f32.mrf.mxu0
    %280 = vdwg.mxu0
    %vm281 = vcmp.gt.f32.partialorder %v275, 0.0
    %vm282 = vcmp.gt.f32.partialorder %v278, 0.0
    %s283 = sld [smem:[#allocation2 + $0x1]]
    %v284 = vstv %s283
    %v285 = vmul.f32 %v284, %v275
    %v286 = vmul.f32 %v284, %v278
    %v287 = vsel %vm281, %v275, %v285
    %v288 = vsel %vm282, %v278, %v286
    %v289 = vpack.c.bf16 %v288, %v287
    %v290 = vld [vmem:[#allocation10] sm:$0xf]
    %v291 = vld [vmem:[#allocation10 + $0x4] sm:$0xf]
    %v292 = vld [vmem:[#allocation10 + $0x8] sm:$0xf]
    %v293 = vld [vmem:[#allocation10 + $0xc] sm:$0xf]
    %v294 = vld [vmem:[#allocation10 + $0x10] sm:$0xf]
    %v295 = vld [vmem:[#allocation10 + $0x14] sm:$0xf]
    %v296 = vld [vmem:[#allocation10 + $0x18] sm:$0xf]
    %v297 = vld [vmem:[#allocation10 + $0x1c] sm:$0xf]
    %v298 = vld [vmem:[#allocation10 + $0x20] sm:$0xf]
    %v299 = vld [vmem:[#allocation10 + $0x24] sm:$0xf]
    %v300 = vld [vmem:[#allocation10 + $0x28] sm:$0xf]
    %v301 = vld [vmem:[#allocation10 + $0x2c] sm:$0xf]
    %v302 = vld [vmem:[#allocation10 + $0x30] sm:$0xf]
    %v303 = vld [vmem:[#allocation10 + $0x34] sm:$0xf]
    %v304 = vld [vmem:[#allocation10 + $0x38] sm:$0xf]
    %v305 = vld [vmem:[#allocation10 + $0x3c] sm:$0xf]
    %v306 = vld [vmem:[%s7] sm:$0x1]
    %v308 = vlaneseq
    %v309 = vshrl.u32 %v308, 7
    %v310 = vsub.s32 0, %v309
    %v311 = vrot.slane %v306, %v310
    %v329 = vunpack.c.l.b16 %v290
    %v330 = vunpack.c.l.b16 %v291
    %v331 = vunpack.c.l.b16 %v292
    %v332 = vunpack.c.l.b16 %v293
    %v333 = vunpack.c.l.b16 %v294
    %v334 = vunpack.c.l.b16 %v295
    %v335 = vunpack.c.l.b16 %v296
    %v336 = vunpack.c.l.b16 %v297
    %v337 = vunpack.c.l.b16 %v298
    %v338 = vunpack.c.l.b16 %v299
    %v339 = vunpack.c.l.b16 %v300
    %v340 = vunpack.c.l.b16 %v301
    %v341 = vunpack.c.l.b16 %v302
    %v342 = vunpack.c.l.b16 %v303
    %v343 = vunpack.c.l.b16 %v304
    %v344 = vunpack.c.l.b16 %v305
    %v345 = vpack.c.b16 %v330, %v329
    %v346 = vpack.c.b16 %v332, %v331
    %v347 = vpack.c.b16 %v334, %v333
    %v348 = vpack.c.b16 %v336, %v335
    %v349 = vpack.c.b16 %v338, %v337
    %v350 = vpack.c.b16 %v340, %v339
    %v351 = vpack.c.b16 %v342, %v341
    %v352 = vpack.c.b16 %v344, %v343
    %361 = vmatprep.subr.bf16.mxu0 0
    %362 = vmatpush1.bf16.msra.mxu0 %v352
    %363 = vmatprep.subr.bf16.mxu0 0
    %364 = vmatpush1.bf16.msra.mxu0 %v351
    %365 = vmatprep.subr.bf16.mxu0 0
    %366 = vmatpush1.bf16.msra.mxu0 %v350
    %367 = vmatprep.subr.bf16.mxu0 0
    %368 = vmatpush1.bf16.msra.mxu0 %v349
    %369 = vmatprep.subr.bf16.mxu0 0
    %370 = vmatpush1.bf16.msra.mxu0 %v348
    %371 = vmatprep.subr.bf16.mxu0 0
    %372 = vmatpush1.bf16.msra.mxu0 %v347
    %373 = vmatprep.subr.bf16.mxu0 0
    %374 = vmatpush1.bf16.msra.mxu0 %v346
    %375 = vmatprep.subr.bf16.mxu0 0
    %376 = vmatpush1.bf16.msra.mxu0 %v345
    %377 = vmatprep.subr.bf16.mxu0 0
    %378 = vmatpush2.bf16.msra.mxu0 0
    %379 = vmatprep.subr.bf16.mxu0 0
    %380 = vmatpush2.bf16.msra.mxu0 0
    %381 = vmatprep.subr.bf16.mxu0 0
    %382 = vmatpush2.bf16.msra.mxu0 0
    %383 = vmatprep.subr.bf16.mxu0 0
    %384 = vmatpush2.bf16.msra.mxu0 0
    %385 = vmatprep.subr.bf16.mxu0 0
    %386 = vmatpush2.bf16.msra.mxu0 0
    %387 = vmatprep.subr.bf16.mxu0 0
    %388 = vmatpush2.bf16.msra.mxu0 0
    %389 = vmatprep.subr.bf16.mxu0 0
    %390 = vmatpush2.bf16.msra.mxu0 0
    %391 = vmatprep.subr.bf16.mxu0 0
    %392 = vmatpush2.bf16.msra.mxu0 0
    %393 = vmatprep.mubr.bf16.mxu0 0
    %394 = vmatmul.mubr.bf16.gmra.mxu0 %v289
    %v395 = vpop.f32.mrf.mxu0
    %v396 = vadd.f32 %v311, %v395
    %v397 = vpop.f32.mrf.mxu0
    %v398 = vpop.f32.mrf.mxu0
    %v399 = vadd.f32 %v311, %v398
    %v400 = vpop.f32.mrf.mxu0
    %401 = vdwg.mxu0
    %v402 = vpack.c.bf16 %v399, %v396
    %v404 = vunpack.c.l.b16 %v402
    %v405 = vunpack.c.h.b16 %v402
    %v406 = vpack.c.b16 %v404, %v404
    %v407 = vpack.c.b16 %v405, %v405
    %410 = vst [vmem:[#allocation12] sm:$0xf] %v406
    %411 = vst [vmem:[#allocation12 + $0x4] sm:$0xf] %v407
    // Predicated region
    $region54: #{tpu_custom_call.1} parent=1 // pred_check
      _
    $region55: #{tpu_custom_call.1} parent=1 // pred_check_branch
      %413 = sbr.rel (0) target = $region57
    $region56: #{tpu_custom_call.1} parent=1 // pred_region
      %s415 = ssub.s32 128, 128
      %416 = vsyncadd [#allocation4], %s415
      %s417 = sshll.u32 [#allocation12], 4
      %s418 = int_to_ptr.vmem [resolvable:$true] %s417
      %423 = dma.vmem_to_hbm [thread:$0]  %s418, 128, %s8, [#allocation4], 64, 64, 4
    $region57: #{tpu_custom_call.1} parent=1 // pred_fallthru
      _
    // Predicated region
    $region58: #{tpu_custom_call.1} parent=1 // pred_check
      _
    $region59: #{tpu_custom_call.1} parent=1 // pred_check_branch
      %425 = sbr.rel (0) target = $region61
    $region60: #{tpu_custom_call.1} parent=1 // pred_region
      %426 = dma.done [#allocation4], 128
    $region61: #{tpu_custom_call.1} parent=1 // pred_fallthru
      _
    %427 = vsyncpa [#allocation3], 1
    %428 = vsyncpa [#allocation8], 1
    %429 = vsyncpa [#allocation11], 1
    %430 = vsyncpa [#allocation4], 1
    %431 = vsyncpa [#allocation5], 1

</llo_original>
